<compile_context>
chip_gen: v5e
topology: v5e:2x2
jax: 0.10.0
libtpu: 0.0.40
codegen_flags: <defaults>
</compile_context>

<pallas_src>
import functools

import jax
import jax.numpy as jnp
from jax.experimental import pallas as pl
from jax.experimental.pallas import tpu as pltpu


def _importance_kernel(x_ref, o_ref, acc_ref, *, inv_batch):
    """One grid step processes a (b_blk, S, H) slab of hidden states.

    Grid: (num_cores, nb). Axis 0 is "parallel" (per-core partial sum),
    axis 1 is the batch-block reduction ("arbitrary").

    x_ref  : (b_blk, S, H) VMEM input tile.
    o_ref  : (1, 1, S)     per-core partial-result tile (block index = core).
    acc_ref: (1, S) f32    VMEM scratch accumulator, resident across axis 1.
    """
    i = pl.program_id(1)

    @pl.when(i == 0)
    def _init():
        acc_ref[...] = jnp.zeros_like(acc_ref)

    x = x_ref[...].astype(jnp.float32)                     # (b_blk, S, H)
    # colsum_b = sum_i x[b, i, :]  -> cheap sublane reduce, shape (b_blk, 1, H)
    col_sum = jnp.sum(x, axis=1, keepdims=True)
    # per-batch contraction over H (trans-RHS mode on the MXU, no x.T copy):
    #   per_batch[b, 0, j] = sum_h col_sum[b, 0, h] * x[b, j, h]
    per_batch = jax.lax.dot_general(
        col_sum, x,
        dimension_numbers=(((2,), (2,)), ((0,), (0,))),
        preferred_element_type=jnp.float32,
    )                                                      # (b_blk, 1, S)
    acc_ref[...] += jnp.sum(per_batch, axis=0)             # (1, S)

    @pl.when(i == pl.num_programs(1) - 1)
    def _finalize():
        # mean over the true (unpadded) batch applied once; zero-padded
        # batches contribute nothing to the accumulated sums.
        o_ref[...] = (acc_ref[...] * inv_batch).reshape(1, 1, -1)


def importance_scores(last_hidden_state: jax.Array,
                      *,
                      b_blk: int | None = None,
                      num_cores: int = 2,
                      block_budget_bytes: int = 6 * 1024 * 1024) -> jax.Array:
    """last_hidden_state: [B, S, H] float32/bfloat16 -> importance scores [S] f32."""
    B, S, H = last_hidden_state.shape
    itemsize = jnp.dtype(last_hidden_state.dtype).itemsize
    per_batch_bytes = S * H * itemsize

    if b_blk is None:
        # Largest batch block whose tile stays under the budget (>=1); keeps
        # double-buffered input DMAs large but within scoped VMEM on all gens.
        b_blk = max(1, min(B, block_budget_bytes // max(per_batch_bytes, 1)))

    nb = pl.cdiv(B, num_cores * b_blk)          # reduction steps per core
    B_pad = num_cores * nb * b_blk
    x = last_hidden_state
    if B_pad != B:
        # Zero padding is exact: padded batches add 0 to every partial sum.
        x = jnp.pad(x, ((0, B_pad - B), (0, 0), (0, 0)))

    kernel = functools.partial(_importance_kernel, inv_batch=1.0 / B)

    partials = pl.pallas_call(
        kernel,
        out_shape=jax.ShapeDtypeStruct((num_cores, 1, S), jnp.float32),
        grid_spec=pltpu.PrefetchScalarGridSpec(
            num_scalar_prefetch=0,
            grid=(num_cores, nb),
            in_specs=[
                pl.BlockSpec((b_blk, S, H), lambda c, i: (c * nb + i, 0, 0)),
            ],
            out_specs=pl.BlockSpec((1, 1, S), lambda c, i: (c, 0, 0)),
            scratch_shapes=[pltpu.VMEM((1, S), jnp.float32)],
        ),
        compiler_params=pltpu.CompilerParams(
            dimension_semantics=("parallel", "arbitrary"),
        ),
    )(x)

    # Combine the (at most 2) per-core partial sums; /B already applied.
    return jnp.sum(partials, axis=0).reshape(S)


def importance_scores_ref(last_hidden_state: jax.Array) -> jax.Array:
    """Pure-JAX reference mirroring the PyTorch forward."""
    x = last_hidden_state.astype(jnp.float32)
    aw = jnp.einsum("bsh,bth->bst", x, x)
    avg = aw.mean(axis=0)
    return avg.sum(axis=0)


if __name__ == "__main__":
    key = jax.random.PRNGKey(0)
    B, S, H = 2, 8, 32  # small synthetic shapes consistent with [batch, seq, hidden]
    last_hidden_state = jax.random.normal(key, (B, S, H), dtype=jnp.float32)

    scores = jax.block_until_ready(importance_scores(last_hidden_state))
    ref = importance_scores_ref(last_hidden_state)

    assert scores.shape == (S,)
    assert jnp.allclose(scores, ref, atol=1e-4, rtol=1e-4), (scores, ref)

    print("KERNEL_OK")
</pallas_src>

<mosaic_0001>
module attributes {stable_mosaic.version = 11 : i64} {
  func.func @_importance_kernel(%arg0: i32, %arg1: i32, %arg2: memref<2x8x32xf32, #tpu.memory_space<vmem>>, %arg3: memref<1x1x8xf32, #tpu.memory_space<vmem>>, %arg4: memref<1x8xf32, #tpu.memory_space<vmem>>) attributes {dimension_semantics = [#tpu.dimension_semantics<parallel>, #tpu.dimension_semantics<arbitrary>], iteration_bounds = array<i64: 2, 1>, scalar_prefetch = 0 : i64, scratch_operands = 1 : i64, tpu.core_type = #tpu.core_type<tc>, window_params = [{transform_indices = @transform_0, window_bounds = array<i64: 2, 8, 32>}, {transform_indices = @transform_1, window_bounds = array<i64: 1, 1, 8>}]} {
    %c0_i32 = arith.constant 0 : i32
    %0 = arith.cmpi eq, %arg1, %c0_i32 : i32
    %1 = arith.extui %0 : i1 to i32
    %c0_i32_0 = arith.constant 0 : i32
    %2 = arith.cmpi ne, %1, %c0_i32_0 : i32
    scf.if %2 {
      %cst_11 = arith.constant 0.000000e+00 : f32
      %14 = vector.broadcast %cst_11 : f32 to vector<1x8xf32>
      %c0_12 = arith.constant 0 : index
      %c0_13 = arith.constant 0 : index
      %15 = vector.load %arg4[%c0_12, %c0_13] : memref<1x8xf32, #tpu.memory_space<vmem>>, vector<1x8xf32>
      tpu.vector_store %arg4[%c0_12, %c0_13], %14 {strides = array<i32>} : memref<1x8xf32, #tpu.memory_space<vmem>>, vector<1x8xf32>,
    } else {
    }
    %c0 = arith.constant 0 : index
    %c0_1 = arith.constant 0 : index
    %c0_2 = arith.constant 0 : index
    %3 = vector.load %arg2[%c0, %c0_1, %c0_2] : memref<2x8x32xf32, #tpu.memory_space<vmem>>, vector<2x8x32xf32>
    %cst = arith.constant dense<0.000000e+00> : vector<2x32xf32>
    %4 = vector.multi_reduction <add>, %3, %cst [1] : vector<2x8x32xf32> to vector<2x32xf32>
    %5 = vector.shape_cast %4 : vector<2x32xf32> to vector<2x1x32xf32>
    %cst_3 = arith.constant dense<0.000000e+00> : vector<2x1x8xf32>
    %6 = tpu.matmul %5, %3, %cst_3 {dimension_numbers = #tpu.dot_dimension_numbers<[2], [2], [1], [1], [0, 0, 0, 1, 1, 1], [0], [0]>} : vector<2x1x32xf32>, vector<2x8x32xf32>, vector<2x1x8xf32> -> vector<2x1x8xf32>
    %c0_4 = arith.constant 0 : index
    %c0_5 = arith.constant 0 : index
    %7 = vector.load %arg4[%c0_4, %c0_5] : memref<1x8xf32, #tpu.memory_space<vmem>>, vector<1x8xf32>
    %cst_6 = arith.constant dense<0.000000e+00> : vector<1x8xf32>
    %8 = vector.multi_reduction <add>, %6, %cst_6 [0] : vector<2x1x8xf32> to vector<1x8xf32>
    %9 = arith.addf %7, %8 : vector<1x8xf32>
    %c0_7 = arith.constant 0 : index
    %c0_8 = arith.constant 0 : index
    %10 = vector.load %arg4[%c0_7, %c0_8] : memref<1x8xf32, #tpu.memory_space<vmem>>, vector<1x8xf32>
    tpu.vector_store %arg4[%c0_7, %c0_8], %9 {strides = array<i32>} : memref<1x8xf32, #tpu.memory_space<vmem>>, vector<1x8xf32>,
    %c0_i32_9 = arith.constant 0 : i32
    %11 = arith.cmpi eq, %arg1, %c0_i32_9 : i32
    %12 = arith.extui %11 : i1 to i32
    %c0_i32_10 = arith.constant 0 : i32
    %13 = arith.cmpi ne, %12, %c0_i32_10 : i32
    scf.if %13 {
      %c0_11 = arith.constant 0 : index
      %c0_12 = arith.constant 0 : index
      %14 = vector.load %arg4[%c0_11, %c0_12] : memref<1x8xf32, #tpu.memory_space<vmem>>, vector<1x8xf32>
      %cst_13 = arith.constant 5.000000e-01 : f32
      %15 = vector.broadcast %cst_13 : f32 to vector<1x8xf32>
      %16 = arith.mulf %14, %15 : vector<1x8xf32>
      %17 = vector.shape_cast %16 : vector<1x8xf32> to vector<1x1x8xf32>
      %c0_14 = arith.constant 0 : index
      %c0_15 = arith.constant 0 : index
      %c0_16 = arith.constant 0 : index
      %18 = vector.load %arg3[%c0_14, %c0_15, %c0_16] : memref<1x1x8xf32, #tpu.memory_space<vmem>>, vector<1x1x8xf32>
      tpu.vector_store %arg3[%c0_14, %c0_15, %c0_16], %17 {strides = array<i32>} : memref<1x1x8xf32, #tpu.memory_space<vmem>>, vector<1x1x8xf32>,
    } else {
    }
    return
  }
  func.func @transform_0(%arg0: i32, %arg1: i32) -> (i32, i32, i32) {
    %c1_i32 = arith.constant 1 : i32
    %0 = arith.muli %arg0, %c1_i32 : i32
    %1 = arith.addi %0, %arg1 : i32
    %c0_i32 = arith.constant 0 : i32
    %c0_i32_0 = arith.constant 0 : i32
    %c0_i32_1 = arith.constant 0 : i32
    return %1, %c0_i32, %c0_i32_0 : i32, i32, i32
  }
  func.func @transform_1(%arg0: i32, %arg1: i32) -> (i32, i32, i32) {
    %c0_i32 = arith.constant 0 : i32
    %c0_i32_0 = arith.constant 0 : i32
    %c0_i32_1 = arith.constant 0 : i32
    return %arg0, %c0_i32, %c0_i32_0 : i32, i32, i32
  }
}

</mosaic_0001>

<llo_original>
// kernel: tpu_custom_call.1
$region0: #{tpu_custom_call.1}
  #allocation0 [shape = 'u32[]', space=smem, size = 0x4, offset = 0x4, fixed_abs, tag = 'smem constant byte address 0x4 - core index']
  #allocation1 [shape = 'u32[72,128]{1,0:T(1,128)}', space=vmem, size = 0x9000, scoped, tag = 'internal scratch']
  #allocation2 [shape = 'f32[1,8]{1,0:T(1,128)}', space=vmem, size = 0x200, scoped, tag = 'scratch operand']
  %s0 = inlined_call_operand.hbm [shape: f32[4,8,32], index: 0, kind: input, shape index: {}]
  %s1 = inlined_call_operand.hbm [shape: f32[2,1,8], index: 1, kind: output, shape index: {}]
  %s2 = sld [smem:[#allocation0]]
  $region49: #{tpu_custom_call.1} parent=0
    _
  %s4 = ssub.s32 1, %s2
  %s5 = scalar_select 0, %s4, %s2
  $region1: #{tpu_custom_call.1} parent=0
    #allocation3 [shape = 'u8[16384]{0}', space=vmem, size = 0x4000, scoped, tag = 'input window, operand 0']
    #allocation4 [shape = 's32[2]{0}', space=sflag, size = 0x8, scoped, tag = 'scoped memory for tpu_custom_call.1']
    #allocation5 [shape = 's32[2]{0}', space=sflag, size = 0x8, scoped, tag = 'scoped memory for tpu_custom_call.1']
    #allocation6 [shape = 'u8[1024]{0}', space=vmem, size = 0x400, scoped, tag = 'output window, operand 0']
    %6 = vsyncpa [#allocation4], 0
    %s7 = scalar_lea.sflag [#allocation4], 1
    %8 = vsyncpa %s7, 0
    %9 = vsyncpa [#allocation5], 0
    %s10 = scalar_lea.sflag [#allocation5], 1
    %11 = vsyncpa %s10, 0
    loop: start=0, step=1, limit=4
    $region2: #{tpu_custom_call.1} parent=1 // loop_pre_header
      _
    $region3: #{tpu_custom_call.1} parent=1 // loop_header
      %s13 = sphi 0, %s17
      %p14 = scmp.ge.s32.totalorder %s13, 4
      %s20 = sphi 0, %s32
      %s21 = sphi 0, %s28
      %s22 = sphi 0, %s20
      %s23 = sphi 0, %s21
      %s24 = sphi 0, %s22
      %s25 = sphi 0, %s23
      %s37 = sphi 0, %s39
      %s40 = sphi 0, %s37
      %s41 = sphi 0, %s40
      %s57 = sphi 0, %s41
      %s63 = sphi 0, %s65
      %s66 = sphi 0, %s63
      %s67 = sphi 0, %s66
      %s83 = sphi 0, %s67
    $region4: #{tpu_custom_call.1} parent=1 // loop_header_branch
      %16 = sbr.rel (%p14) target = $region8
    $region5: #{tpu_custom_call.1} parent=1 // loop_body
      %s18 = ssub.s32 %s13, 1
      %s19 = ssub.s32 %s13, 2
      %s26 = sadd.s32 1, %s21
      %p27 = scmp.ge.s32.totalorder %s26, 1
      %s28 = scalar_select %p27, 0, %s26
      %s29 = sadd.s32 1, %s20
      %s30 = scalar_select %p27, %s29, %s20
      %p31 = scmp.ge.s32.totalorder %s30, 2
      %s32 = scalar_select %p31, 0, %s30
      %s33 = sadd.s32 %s20, %s21
      %s34 = sadd.s32 %s32, %s28
      %s35 = ssub.s32 %s33, %s34
      %p36 = scmp.eq.s32.totalorder %s35, 0
      %s38 = sadd.s32 %s37, 1
      %s39 = scalar_select %p36, %s37, %s38
      %p42 = pneg %p36
      %p43 = scmp.eq.s32.totalorder %s13, 1
      %p44 = por %p42, %p43
      %p45 = scmp.ne.s32.totalorder %s37, %s40
      %p46 = scmp.eq.s32.totalorder %s13, 0
      %p47 = por %p45, %p46
      %p48 = scmp.ne.s32.totalorder %s37, %s40
      %p49 = scmp.eq.s32.totalorder %s18, 1
      %p50 = por %p48, %p49
      %p51 = scmp.ne.s32.totalorder %s40, %s41
      %p52 = scmp.eq.s32.totalorder %s18, 0
      %p53 = por %p51, %p52
      %p54 = scmp.ne.s32.totalorder %s40, %s41
      %p55 = scmp.eq.s32.totalorder %s19, 1
      %p56 = por %p54, %p55
      %p58 = scmp.ne.s32.totalorder %s41, %s57
      %p59 = scmp.eq.s32.totalorder %s19, 0
      %p60 = por %p58, %p59
      %s61 = ssub.s32 %s20, %s32
      %p62 = scmp.eq.s32.totalorder %s61, 0
      %s64 = sadd.s32 %s63, 1
      %s65 = scalar_select %p62, %s63, %s64
      %p68 = pneg %p62
      %p69 = scmp.eq.s32.totalorder %s13, 1
      %p70 = por %p68, %p69
      %p71 = scmp.ne.s32.totalorder %s63, %s66
      %p72 = scmp.eq.s32.totalorder %s13, 0
      %p73 = por %p71, %p72
      %p74 = scmp.ne.s32.totalorder %s63, %s66
      %p75 = scmp.eq.s32.totalorder %s18, 1
      %p76 = por %p74, %p75
      %p77 = scmp.ne.s32.totalorder %s66, %s67
      %p78 = scmp.eq.s32.totalorder %s18, 0
      %p79 = por %p77, %p78
      %p80 = scmp.ne.s32.totalorder %s66, %s67
      %p81 = scmp.eq.s32.totalorder %s19, 1
      %p82 = por %p80, %p81
      %p84 = scmp.ne.s32.totalorder %s67, %s83
      %p85 = scmp.eq.s32.totalorder %s19, 0
      %p86 = por %p84, %p85
      %p87 = scmp.le.s32.totalorder 1, %s13
      %p88 = scmp.lt.s32.totalorder %s13, 3
      %p89 = pnand %p87, %p88
      %p90 = pneg %p89
      // Predicated region
      $region9: #{tpu_custom_call.1} parent=5 // pred_check
        _
      $region10: #{tpu_custom_call.1} parent=5 // pred_check_branch
        %92 = sbr.rel (%p89) target = $region12
      $region11: #{tpu_custom_call.1} parent=5 // pred_region
        %s93 = ssub.s32 %s13, 1
      $region12: #{tpu_custom_call.1} parent=5 // pred_fallthru
        _
      %p94 = scmp.lt.s32.totalorder %s13, 2
      // Predicated region
      $region13: #{tpu_custom_call.1} parent=5 // pred_check
        %p95 = pneg %p94
      $region14: #{tpu_custom_call.1} parent=5 // pred_check_branch
        %97 = sbr.rel (%p95) target = $region16
      $region15: #{tpu_custom_call.1} parent=5 // pred_region
        // Predicated region
        $region17: #{tpu_custom_call.1} parent=15 // pred_check
          %p98 = pneg %p47
        $region18: #{tpu_custom_call.1} parent=15 // pred_check_branch
          %100 = sbr.rel (%p98) target = $region20
        $region19: #{tpu_custom_call.1} parent=15 // pred_region
          %s101 = sand.u32 %s37, 1
          %s102 = scalar_lea.sflag [#allocation4], %s101
          %s103 = sand.u32 %s37, 1
          %s104 = smul.addr %s103, 16
          %s105 = scalar_lea.vmem [#allocation3], %s104
          %s106 = sadd.s32 %s20, %s21
          %s107 = smul.u32 2, %s106
          %109 = vsyncadd %s102, 0
          %s110 = smul.addr %s107, 8
          %s111 = scalar_lea.hbm %s0, %s110
          %s112 = sshll.u32 %s111, 4
          %s113 = int_to_ptr.hbm [resolvable:$true] %s112
          %s114 = sshll.u32 %s105, 4
          %s115 = int_to_ptr.vmem [resolvable:$true] %s114
          %120 = dma.hbm_to_vmem [thread:$0]  %s113, 256, %s115, %s102, 128, 128, 8
        $region20: #{tpu_custom_call.1} parent=15 // pred_fallthru
          _
      $region16: #{tpu_custom_call.1} parent=5 // pred_fallthru
        _
      %p121 = scmp.le.s32.totalorder 1, %s13
      %p122 = scmp.lt.s32.totalorder %s13, 3
      %p123 = pnand %p121, %p122
      %p124 = pneg %p123
      // Predicated region
      $region21: #{tpu_custom_call.1} parent=5 // pred_check
        _
      $region22: #{tpu_custom_call.1} parent=5 // pred_check_branch
        %126 = sbr.rel (%p123) target = $region24
      $region23: #{tpu_custom_call.1} parent=5 // pred_region
        %s127 = ssub.s32 %s13, 1
        %s128 = sand.u32 %s40, 1
        %s129 = scalar_lea.sflag [#allocation4], %s128
        %s130 = sand.u32 %s40, 1
        %s131 = smul.addr %s130, 16
        %s132 = scalar_lea.vmem [#allocation3], %s131
        // Predicated region
        $region25: #{tpu_custom_call.1} parent=23 // pred_check
          %p133 = pneg %p53
        $region26: #{tpu_custom_call.1} parent=23 // pred_check_branch
          %135 = sbr.rel (%p133) target = $region28
        $region27: #{tpu_custom_call.1} parent=23 // pred_region
          %137 = dma.done %s129, 256
        $region28: #{tpu_custom_call.1} parent=23 // pred_fallthru
          _
        %s138 = sand.u32 %s40, 1
        %s139 = scalar_lea.sflag [#allocation4], %s138
        %s140 = sand.u32 %s40, 1
        %s141 = smul.addr %s140, 16
        %s142 = scalar_lea.vmem [#allocation3], %s141
        %p143 = pneg %p53
        %p144 = pneg %p50
        %p145 = pneg %p79
        %p146 = pneg %p76
        %s147 = sand.u32 %s66, 1
        %s148 = scalar_lea.sflag [#allocation5], %s147
        %s149 = sand.u32 %s66, 1
        %s150 = scalar_lea.vmem [#allocation6], %s149
        %s151 = sadd.s32 %s22, %s23
        %s152 = smul.u32 2, %s151
        %p153 = scmp.eq.s32.totalorder %s23, 0
        // Predicated region
        $region29: #{tpu_custom_call.1} parent=23 // pred_check
          %p154 = pneg %p153
        $region30: #{tpu_custom_call.1} parent=23 // pred_check_branch
          %156 = sbr.rel (%p154) target = $region32
        $region31: #{tpu_custom_call.1} parent=23 // pred_region
          %vm157 = vcmask 57344
          %158 = vst.msk [vmem:[#allocation2] sm:$0x1] %vm157, 0.0
        $region32: #{tpu_custom_call.1} parent=23 // pred_fallthru
          _
        %v159 = vld [vmem:[%s132] sm:$0xff]
        %v160 = vld [vmem:[%s132 + $0x8] sm:$0xff]
        %vm161 = vcmask 261120
        %v162 = vsel %vm161, %v159, 0.0
        %v163 = vrot.slane %v162, 4
        %v164 = vadd.f32 %v162, %v163
        %v165 = vrot.slane %v164, 2
        %v166 = vadd.f32 %v164, %v165
        %v167 = vrot.slane %v166, 1
        %v168 = vadd.f32 %v166, %v167
        %v169 = vsel %vm161, %v160, 0.0
        %v170 = vrot.slane %v169, 4
        %v171 = vadd.f32 %v169, %v170
        %v172 = vrot.slane %v171, 2
        %v173 = vadd.f32 %v171, %v172
        %v174 = vrot.slane %v173, 1
        %v175 = vadd.f32 %v173, %v174
        %v177 = vsel %vm161, %v168, 0
        %v180 = vsel %vm161, %v159, 0
        %182 = vmatpush.xpose.msra.mxu0 0.0
        %183 = vmatpush.xpose.msra.mxu0 0.0
        %184 = vmatpush.xpose.msra.mxu0 0.0
        %185 = vmatpush.xpose.msra.mxu0 0.0
        %186 = vmatpush.xpose.msra.mxu0 0.0
        %187 = vmatpush.xpose.msra.mxu0 0.0
        %188 = vmatpush.xpose.msra.mxu0 0.0
        %189 = vmatpush.xpose.msra.mxu0 0.0
        %190 = vmatpush.xpose.msra.mxu0 0.0
        %191 = vmatpush.xpose.msra.mxu0 0.0
        %192 = vmatpush.xpose.msra.mxu0 0.0
        %193 = vmatpush.xpose.msra.mxu0 0.0
        %194 = vmatpush.xpose.msra.mxu0 0.0
        %195 = vmatpush.xpose.msra.mxu0 0.0
        %196 = vmatpush.xpose.msra.mxu0 0.0
        %197 = vmatpush.xpose.msra.mxu0 %v180
        %198 = vmatmul.f32.gmra.mxu0 %v177
        %v199 = vpop.f32.mrf.mxu0
        %v200 = vadd.f32 0.0, %v199
        %201 = vdwg.mxu0
        %v203 = vsel %vm161, %v175, 0
        %v206 = vsel %vm161, %v160, 0
        %208 = vmatpush.xpose.msra.mxu0 0.0
        %209 = vmatpush.xpose.msra.mxu0 0.0
        %210 = vmatpush.xpose.msra.mxu0 0.0
        %211 = vmatpush.xpose.msra.mxu0 0.0
        %212 = vmatpush.xpose.msra.mxu0 0.0
        %213 = vmatpush.xpose.msra.mxu0 0.0
        %214 = vmatpush.xpose.msra.mxu0 0.0
        %215 = vmatpush.xpose.msra.mxu0 0.0
        %216 = vmatpush.xpose.msra.mxu0 0.0
        %217 = vmatpush.xpose.msra.mxu0 0.0
        %218 = vmatpush.xpose.msra.mxu0 0.0
        %219 = vmatpush.xpose.msra.mxu0 0.0
        %220 = vmatpush.xpose.msra.mxu0 0.0
        %221 = vmatpush.xpose.msra.mxu0 0.0
        %222 = vmatpush.xpose.msra.mxu0 0.0
        %223 = vmatpush.xpose.msra.mxu0 %v206
        %224 = vmatmul.f32.gmra.mxu0 %v203
        %v225 = vpop.f32.mrf.mxu0
        %v226 = vadd.f32 0.0, %v225
        %227 = vdwg.mxu0
        %v228 = vld [vmem:[#allocation2] sm:$0x1]
        %vm229 = vcmask 57344
        %v230 = vsel %vm229, %v200, 0.0
        %v231 = vsel %vm229, %v226, 0.0
        %v232 = vadd.f32 %v230, %v231
        %v233 = vadd.f32 %v228, %v232
        %234 = vst.msk [vmem:[#allocation2] sm:$0x1] %vm229, %v233
        // Predicated region
        $region33: #{tpu_custom_call.1} parent=23 // pred_check
          %p235 = pneg %p153
        $region34: #{tpu_custom_call.1} parent=23 // pred_check_branch
          %237 = sbr.rel (%p235) target = $region36
        $region35: #{tpu_custom_call.1} parent=23 // pred_region
          %v238 = vld [vmem:[#allocation2] sm:$0x1]
          %v239 = vmul.f32 %v238, 0.5
          %240 = vst.msk [vmem:[%s150] sm:$0x1] %vm229, %v239
        $region36: #{tpu_custom_call.1} parent=23 // pred_fallthru
          _
        %s241 = sand.u32 %s66, 1
        %s242 = scalar_lea.sflag [#allocation5], %s241
        %s243 = sand.u32 %s66, 1
        %s244 = scalar_lea.vmem [#allocation6], %s243
        // Predicated region
        $region37: #{tpu_custom_call.1} parent=23 // pred_check
          %p245 = pneg %p76
        $region38: #{tpu_custom_call.1} parent=23 // pred_check_branch
          %247 = sbr.rel (%p245) target = $region40
        $region39: #{tpu_custom_call.1} parent=23 // pred_region
          %249 = vsyncadd %s242, 0
          %s250 = scalar_lea.hbm %s1, %s22
          %s252 = sshll.u32 %s244, 4
          %s253 = int_to_ptr.vmem [resolvable:$true] %s252
          %s254 = sshll.u32 %s250, 4
          %s255 = int_to_ptr.hbm [resolvable:$true] %s254
          %257 = dma.vmem_to_hbm [thread:$0]  %s253, 16, %s255, %s242
        $region40: #{tpu_custom_call.1} parent=23 // pred_fallthru
          _
      $region24: #{tpu_custom_call.1} parent=5 // pred_fallthru
        _
      %p258 = scmp.le.s32.totalorder 2, %s13
      // Predicated region
      $region41: #{tpu_custom_call.1} parent=5 // pred_check
        %p259 = pneg %p258
      $region42: #{tpu_custom_call.1} parent=5 // pred_check_branch
        %261 = sbr.rel (%p259) target = $region44
      $region43: #{tpu_custom_call.1} parent=5 // pred_region
        %s262 = ssub.s32 %s13, 2
        // Predicated region
        $region45: #{tpu_custom_call.1} parent=43 // pred_check
          %p263 = pneg %p82
        $region46: #{tpu_custom_call.1} parent=43 // pred_check_branch
          %265 = sbr.rel (%p263) target = $region48
        $region47: #{tpu_custom_call.1} parent=43 // pred_region
          %s266 = sand.u32 %s67, 1
          %s267 = scalar_lea.sflag [#allocation5], %s266
          %s268 = sand.u32 %s67, 1
          %s269 = scalar_lea.vmem [#allocation6], %s268
          %271 = dma.done %s267, 16
        $region48: #{tpu_custom_call.1} parent=43 // pred_fallthru
          _
      $region44: #{tpu_custom_call.1} parent=5 // pred_fallthru
        _
    $region6: #{tpu_custom_call.1} parent=1 // loop_footer
      %s17 = sadd.s32 1, %s13
    $region7: #{tpu_custom_call.1} parent=1 // loop_footer_branch
      %12 = sbr.rel target = $region3
    $region8: #{tpu_custom_call.1} parent=1 // loop_exit
      _
    %272 = vsyncpa [#allocation4], 1
    %s273 = scalar_lea.sflag [#allocation4], 1
    %274 = vsyncpa %s273, 1
    %275 = vsyncpa [#allocation5], 1
    %s276 = scalar_lea.sflag [#allocation5], 1
    %277 = vsyncpa %s276, 1

</llo_original>
